<compile_context>
chip_gen: v5e
topology: v5e:2x2
jax: 0.10.0
libtpu: 0.0.40
codegen_flags: <defaults>
</compile_context>

<pallas_src>
import functools

import jax
import jax.numpy as jnp
from jax.experimental import pallas as pl
from jax.experimental.pallas import tpu as pltpu


def _round_up(x, m):
    return ((x + m - 1) // m) * m


def _pick_tile_n(n_pad, c, itemsize):
    """Largest lane-aligned sample tile that keeps the double-buffered logits
    stream around ~4 MiB -> safe under the default scoped-VMEM limit on
    v5e (16 MiB), v6e (32 MiB) and v7x (32 MiB of 64 MiB physical)."""
    c_pad = max(8, _round_up(c, 8))           # sublane padding
    budget = 2 * 1024 * 1024                  # bytes per in-flight logits buffer
    tile = budget // (c_pad * itemsize)
    tile = max(128, (tile // 128) * 128)      # lane-aligned
    return int(min(tile, n_pad, 8192))


def _focal_pow(base, gamma):
    """(1 - p_t) ** gamma, specialized for integer gamma (default gamma=2)."""
    g = float(gamma)
    if g.is_integer() and 0 <= int(g) <= 16:
        gi = int(g)
        if gi == 0:
            return jnp.ones_like(base)
        out = base
        for _ in range(gi - 1):
            out = out * base
        return out
    # Non-integer gamma: clamp so 0**gamma never walks the log(0) path.
    return jnp.power(jnp.maximum(base, jnp.float32(1e-30)), g)


def _focal_loss_kernel(logits_ref, targets_ref, out_ref, acc_ref, *,
                       n_valid, gamma, scale):
    """One grid step processes a (C, TILE_N) slab of transposed logits."""
    i = pl.program_id(0)

    @pl.when(i == 0)
    def _init():
        acc_ref[...] = jnp.zeros_like(acc_ref)

    x = logits_ref[...].astype(jnp.float32)        # (C, TILE_N)
    t = targets_ref[...]                           # (1, TILE_N) int32
    tile_n = x.shape[1]

    # One-hot class mask (the scatter_(1, ids, 1.0) of the reference),
    # built across the sublane/class axis.
    cls = jax.lax.broadcasted_iota(jnp.int32, x.shape, 0)
    mask = cls == t                                # (C, TILE_N)

    # log softmax at the target class via log-sum-exp (exact, no log(0)).
    m = jnp.max(x, axis=0, keepdims=True)                           # (1, TN)
    lse = jnp.log(jnp.sum(jnp.exp(x - m), axis=0, keepdims=True))   # (1, TN)
    x_t = jnp.sum(jnp.where(mask, x, 0.0), axis=0, keepdims=True)   # (1, TN)
    log_p_t = x_t - m - lse
    p_t = jnp.exp(log_p_t)

    focal = _focal_pow(1.0 - p_t, gamma)
    per_sample = -focal * log_p_t                  # (1, TN); alpha in `scale`

    # Mask out lane-padding / out-of-bounds samples of the last tile.
    col = jax.lax.broadcasted_iota(jnp.int32, per_sample.shape, 1)
    valid = (i * tile_n + col) < n_valid
    per_sample = jnp.where(valid, per_sample, 0.0)

    acc_ref[...] += jnp.sum(per_sample, axis=1, keepdims=True)

    @pl.when(i == pl.num_programs(0) - 1)
    def _finalize():
        # scale = alpha * (1/N if size_average else 1)
        out_ref[...] = acc_ref[...] * scale


def focal_loss(logits, targets, *, class_num, alpha=0.25, gamma=2,
               size_average=True, tile_n=None):
    """logits: (N, C) float32/bfloat16, targets: (N,) int. Returns scalar loss."""
    N, C = logits.shape
    assert C == class_num

    n_pad = _round_up(max(N, 1), 128)
    if tile_n is None:
        tile_n = _pick_tile_n(n_pad, C, jnp.dtype(logits.dtype).itemsize)
    grid = (pl.cdiv(n_pad, tile_n),)

    # Lane-dense layout: (C, N_pad) logits, (1, N_pad) targets.
    x_t = jnp.pad(jnp.transpose(logits), ((0, 0), (0, n_pad - N)))
    tgt = jnp.pad(targets.astype(jnp.int32).reshape(1, N),
                  ((0, 0), (0, n_pad - N)))

    # Uniform alpha (all constructor paths of the torch module) + mean factor.
    scale = float(alpha) * ((1.0 / N) if size_average else 1.0)

    kernel = functools.partial(_focal_loss_kernel, n_valid=N,
                               gamma=float(gamma), scale=scale)

    out = pl.pallas_call(
        kernel,
        out_shape=jax.ShapeDtypeStruct((1, 1), jnp.float32),
        grid=grid,
        in_specs=[
            pl.BlockSpec((C, tile_n), lambda i: (0, i)),   # logits slab
            pl.BlockSpec((1, tile_n), lambda i: (0, i)),   # targets slab
        ],
        out_specs=pl.BlockSpec((1, 1), lambda i: (0, 0)),  # resident scalar
        scratch_shapes=[pltpu.VMEM((1, 1), jnp.float32)],  # running sum
        compiler_params=pltpu.CompilerParams(
            dimension_semantics=("arbitrary",)),
    )(x_t, tgt)
    return out[0, 0]


def _focal_loss_ref(logits, targets, *, alpha=0.25, gamma=2,
                    size_average=True):
    p = jax.nn.softmax(logits.astype(jnp.float32), axis=1)
    probs = jnp.take_along_axis(p, targets.reshape(-1, 1).astype(jnp.int32),
                                axis=1)
    bl = -alpha * jnp.power(1.0 - probs, gamma) * jnp.log(probs)
    return jnp.mean(bl) if size_average else jnp.sum(bl)


if __name__ == "__main__":
    key = jax.random.PRNGKey(0)

    # Small shape consistent with the module's (N, C) forward.
    N, C = 8, 4
    k1, k2, k3, k4 = jax.random.split(key, 4)
    logits = jax.random.normal(k1, (N, C), dtype=jnp.float32)
    targets = jax.random.randint(k2, (N,), 0, C, dtype=jnp.int32)

    loss = focal_loss(logits, targets, class_num=C, alpha=0.25, gamma=2,
                      size_average=True)
    loss = jax.block_until_ready(loss)
    ref = _focal_loss_ref(logits, targets, alpha=0.25, gamma=2,
                          size_average=True)
    assert jnp.allclose(loss, ref, rtol=1e-5, atol=1e-6), (loss, ref)

    # Multi-tile check: exercises the grid, the accumulator and the
    # partial-tile masking (N not a multiple of the tile size), sum reduction.
    N2, C2 = 300, 4
    logits2 = jax.random.normal(k3, (N2, C2), dtype=jnp.float32)
    targets2 = jax.random.randint(k4, (N2,), 0, C2, dtype=jnp.int32)
    loss2 = focal_loss(logits2, targets2, class_num=C2, alpha=0.5, gamma=2,
                       size_average=False, tile_n=128)
    loss2 = jax.block_until_ready(loss2)
    ref2 = _focal_loss_ref(logits2, targets2, alpha=0.5, gamma=2,
                           size_average=False)
    assert jnp.allclose(loss2, ref2, rtol=1e-5, atol=1e-5), (loss2, ref2)

    print("KERNEL_OK")
</pallas_src>

<mosaic_0001>
module attributes {stable_mosaic.version = 11 : i64} {
  func.func @_focal_loss_kernel(%arg0: i32, %arg1: memref<4x128xf32, #tpu.memory_space<vmem>>, %arg2: memref<1x128xi32, #tpu.memory_space<vmem>>, %arg3: memref<1x1xf32, #tpu.memory_space<vmem>>, %arg4: memref<1x1xf32, #tpu.memory_space<vmem>>) attributes {dimension_semantics = [#tpu.dimension_semantics<arbitrary>], iteration_bounds = array<i64: 1>, scalar_prefetch = 0 : i64, scratch_operands = 1 : i64, tpu.core_type = #tpu.core_type<tc>, window_params = [{transform_indices = @transform_0, window_bounds = array<i64: 4, 128>}, {transform_indices = @transform_1, window_bounds = array<i64: 1, 128>}, {pipeline_mode = #tpu.pipeline_mode<synchronous>, transform_indices = @transform_2, window_bounds = array<i64: 1, 1>}]} {
    %c0_i32 = arith.constant 0 : i32
    %0 = arith.cmpi eq, %arg0, %c0_i32 : i32
    %1 = arith.extui %0 : i1 to i32
    %c0_i32_0 = arith.constant 0 : i32
    %2 = arith.cmpi ne, %1, %c0_i32_0 : i32
    scf.if %2 {
      %cst_17 = arith.constant 0.000000e+00 : f32
      %45 = vector.broadcast %cst_17 : f32 to vector<1x1xf32>
      %c0_18 = arith.constant 0 : index
      %c0_19 = arith.constant 0 : index
      %46 = vector.load %arg4[%c0_18, %c0_19] : memref<1x1xf32, #tpu.memory_space<vmem>>, vector<1x1xf32>
      tpu.vector_store %arg4[%c0_18, %c0_19], %45 {strides = array<i32>} : memref<1x1xf32, #tpu.memory_space<vmem>>, vector<1x1xf32>,
    } else {
    }
    %c0 = arith.constant 0 : index
    %c0_1 = arith.constant 0 : index
    %3 = vector.load %arg1[%c0, %c0_1] : memref<4x128xf32, #tpu.memory_space<vmem>>, vector<4x128xf32>
    %c0_2 = arith.constant 0 : index
    %c0_3 = arith.constant 0 : index
    %4 = vector.load %arg2[%c0_2, %c0_3] : memref<1x128xi32, #tpu.memory_space<vmem>>, vector<1x128xi32>
    %5 = tpu.iota {dimensions = array<i32: 0>} : vector<4x128xi32>
    %6 = vector.broadcast %4 : vector<1x128xi32> to vector<4x128xi32>
    %7 = arith.cmpi eq, %5, %6 : vector<4x128xi32>
    %cst = arith.constant dense<0xFF800000> : vector<128xf32>
    %8 = vector.multi_reduction <maximumf>, %3, %cst [0] : vector<4x128xf32> to vector<128xf32>
    %9 = vector.shape_cast %8 : vector<128xf32> to vector<1x128xf32>
    %10 = vector.broadcast %9 : vector<1x128xf32> to vector<4x128xf32>
    %11 = arith.subf %3, %10 : vector<4x128xf32>
    %12 = math.exp %11 : vector<4x128xf32>
    %cst_4 = arith.constant dense<0.000000e+00> : vector<128xf32>
    %13 = vector.multi_reduction <add>, %12, %cst_4 [0] : vector<4x128xf32> to vector<128xf32>
    %14 = vector.shape_cast %13 : vector<128xf32> to vector<1x128xf32>
    %15 = math.log %14 : vector<1x128xf32>
    %cst_5 = arith.constant 0.000000e+00 : f32
    %16 = vector.broadcast %cst_5 : f32 to vector<4x128xf32>
    %17 = arith.select %7, %3, %16 : vector<4x128xi1>, vector<4x128xf32>
    %cst_6 = arith.constant dense<0.000000e+00> : vector<128xf32>
    %18 = vector.multi_reduction <add>, %17, %cst_6 [0] : vector<4x128xf32> to vector<128xf32>
    %19 = vector.shape_cast %18 : vector<128xf32> to vector<1x128xf32>
    %20 = arith.subf %19, %9 : vector<1x128xf32>
    %21 = arith.subf %20, %15 : vector<1x128xf32>
    %22 = math.exp %21 : vector<1x128xf32>
    %cst_7 = arith.constant 1.000000e+00 : f32
    %23 = vector.broadcast %cst_7 : f32 to vector<1x128xf32>
    %24 = arith.subf %23, %22 : vector<1x128xf32>
    %25 = arith.mulf %24, %24 : vector<1x128xf32>
    %cst_8 = arith.constant 0.000000e+00 : f32
    %26 = vector.broadcast %cst_8 : f32 to vector<1x128xf32>
    %27 = arith.subf %26, %25 : vector<1x128xf32>
    %28 = arith.mulf %27, %21 : vector<1x128xf32>
    %29 = tpu.iota {dimensions = array<i32: 1>} : vector<1x128xi32>
    %c128_i32 = arith.constant 128 : i32
    %30 = arith.muli %arg0, %c128_i32 : i32
    %31 = vector.broadcast %30 : i32 to vector<1x128xi32>
    %32 = arith.addi %31, %29 : vector<1x128xi32>
    %c8_i32 = arith.constant 8 : i32
    %33 = vector.broadcast %c8_i32 : i32 to vector<1x128xi32>
    %34 = arith.cmpi slt, %32, %33 : vector<1x128xi32>
    %cst_9 = arith.constant 0.000000e+00 : f32
    %35 = vector.broadcast %cst_9 : f32 to vector<1x128xf32>
    %36 = arith.select %34, %28, %35 : vector<1x128xi1>, vector<1x128xf32>
    %c0_10 = arith.constant 0 : index
    %c0_11 = arith.constant 0 : index
    %37 = vector.load %arg4[%c0_10, %c0_11] : memref<1x1xf32, #tpu.memory_space<vmem>>, vector<1x1xf32>
    %cst_12 = arith.constant dense<0.000000e+00> : vector<1xf32>
    %38 = vector.multi_reduction <add>, %36, %cst_12 [1] : vector<1x128xf32> to vector<1xf32>
    %39 = vector.shape_cast %38 : vector<1xf32> to vector<1x1xf32>
    %40 = arith.addf %37, %39 : vector<1x1xf32>
    %c0_13 = arith.constant 0 : index
    %c0_14 = arith.constant 0 : index
    %41 = vector.load %arg4[%c0_13, %c0_14] : memref<1x1xf32, #tpu.memory_space<vmem>>, vector<1x1xf32>
    tpu.vector_store %arg4[%c0_13, %c0_14], %40 {strides = array<i32>} : memref<1x1xf32, #tpu.memory_space<vmem>>, vector<1x1xf32>,
    %c0_i32_15 = arith.constant 0 : i32
    %42 = arith.cmpi eq, %arg0, %c0_i32_15 : i32
    %43 = arith.extui %42 : i1 to i32
    %c0_i32_16 = arith.constant 0 : i32
    %44 = arith.cmpi ne, %43, %c0_i32_16 : i32
    scf.if %44 {
      %c0_17 = arith.constant 0 : index
      %c0_18 = arith.constant 0 : index
      %45 = vector.load %arg4[%c0_17, %c0_18] : memref<1x1xf32, #tpu.memory_space<vmem>>, vector<1x1xf32>
      %cst_19 = arith.constant 3.125000e-02 : f32
      %46 = vector.broadcast %cst_19 : f32 to vector<1x1xf32>
      %47 = arith.mulf %45, %46 : vector<1x1xf32>
      %c0_20 = arith.constant 0 : index
      %c0_21 = arith.constant 0 : index
      %48 = vector.load %arg3[%c0_20, %c0_21] : memref<1x1xf32, #tpu.memory_space<vmem>>, vector<1x1xf32>
      tpu.vector_store %arg3[%c0_20, %c0_21], %47 {strides = array<i32>} : memref<1x1xf32, #tpu.memory_space<vmem>>, vector<1x1xf32>,
    } else {
    }
    return
  }
  func.func @transform_0(%arg0: i32) -> (i32, i32) {
    %c0_i32 = arith.constant 0 : i32
    %c0_i32_0 = arith.constant 0 : i32
    return %c0_i32, %arg0 : i32, i32
  }
  func.func @transform_1(%arg0: i32) -> (i32, i32) {
    %c0_i32 = arith.constant 0 : i32
    %c0_i32_0 = arith.constant 0 : i32
    return %c0_i32, %arg0 : i32, i32
  }
  func.func @transform_2(%arg0: i32) -> (i32, i32) {
    %c0_i32 = arith.constant 0 : i32
    %c0_i32_0 = arith.constant 0 : i32
    %c0_i32_1 = arith.constant 0 : i32
    return %c0_i32, %c0_i32_0 : i32, i32
  }
}

</mosaic_0001>

<llo_original>
// kernel: tpu_custom_call.1
$region0: #{tpu_custom_call.1}
  #allocation0 [shape = 'u32[]', space=smem, size = 0x4, offset = 0x4, fixed_abs, tag = 'smem constant byte address 0x4 - core index']
  #allocation1 [shape = 'u32[72,128]{1,0:T(1,128)}', space=vmem, size = 0x9000, scoped, tag = 'internal scratch']
  #allocation2 [shape = 'f32[1,1]{1,0:T(1,128)}', space=vmem, size = 0x200, scoped, tag = 'scratch operand']
  %s0 = inlined_call_operand.hbm [shape: f32[4,128], index: 0, kind: input, shape index: {}]
  %s1 = inlined_call_operand.hbm [shape: s32[1,128], index: 1, kind: input, shape index: {}]
  %s2 = inlined_call_operand.hbm [shape: f32[1,1], index: 2, kind: output, shape index: {}]
  %s3 = sld [smem:[#allocation0]]
  $region34: #{tpu_custom_call.1} parent=0
    _
  %s5 = ssub.s32 1, %s3
  %s6 = scalar_select 0, %s5, %s3
  $region1: #{tpu_custom_call.1} parent=0
    #allocation3 [shape = 'u8[2048]{0}', space=vmem, size = 0x800, scoped, tag = 'input window, operand 0, single buffered']
    #allocation4 [shape = 's32[1]{0}', space=sflag, size = 0x4, scoped, tag = 'scoped memory for tpu_custom_call.1']
    #allocation5 [shape = 's32[1]{0}', space=sflag, size = 0x4, scoped, tag = 'scoped memory for tpu_custom_call.1']
    #allocation6 [shape = 'u8[512]{0}', space=vmem, size = 0x400, scoped, tag = 'input window, operand 1, single buffered']
    #allocation7 [shape = 's32[1]{0}', space=sflag, size = 0x4, scoped, tag = 'scoped memory for tpu_custom_call.1']
    #allocation8 [shape = 'u8[512]{0}', space=vmem, size = 0x400, scoped, tag = 'output window, operand 0, single buffered']
    %7 = vsyncpa [#allocation4], 0
    %8 = vsyncpa [#allocation7], 0
    %9 = vsyncpa [#allocation5], 0
    // Predicated region
    $region2: #{tpu_custom_call.1} parent=1 // pred_check
      _
    $region3: #{tpu_custom_call.1} parent=1 // pred_check_branch
      %11 = sbr.rel (0) target = $region5
    $region4: #{tpu_custom_call.1} parent=1 // pred_region
      %13 = vsyncadd [#allocation4], 0
      %s15 = sshll.u32 %s0, 4
      %s16 = int_to_ptr.hbm [resolvable:$true] %s15
      %s17 = sshll.u32 [#allocation3], 4
      %s18 = int_to_ptr.vmem [resolvable:$true] %s17
      %20 = dma.hbm_to_vmem [thread:$0]  %s16, 64, %s18, [#allocation4]
    $region5: #{tpu_custom_call.1} parent=1 // pred_fallthru
      _
    // Predicated region
    $region6: #{tpu_custom_call.1} parent=1 // pred_check
      _
    $region7: #{tpu_custom_call.1} parent=1 // pred_check_branch
      %22 = sbr.rel (0) target = $region9
    $region8: #{tpu_custom_call.1} parent=1 // pred_region
      %24 = vsyncadd [#allocation7], 0
      %s26 = sshll.u32 %s1, 4
      %s27 = int_to_ptr.hbm [resolvable:$true] %s26
      %s28 = sshll.u32 [#allocation6], 4
      %s29 = int_to_ptr.vmem [resolvable:$true] %s28
      %31 = dma.hbm_to_vmem [thread:$0]  %s27, 16, %s29, [#allocation7]
    $region9: #{tpu_custom_call.1} parent=1 // pred_fallthru
      _
    // Predicated region
    $region10: #{tpu_custom_call.1} parent=1 // pred_check
      _
    $region11: #{tpu_custom_call.1} parent=1 // pred_check_branch
      %33 = sbr.rel (0) target = $region13
    $region12: #{tpu_custom_call.1} parent=1 // pred_region
      %35 = dma.done [#allocation4], 64
    $region13: #{tpu_custom_call.1} parent=1 // pred_fallthru
      _
    // Predicated region
    $region14: #{tpu_custom_call.1} parent=1 // pred_check
      _
    $region15: #{tpu_custom_call.1} parent=1 // pred_check_branch
      %37 = sbr.rel (0) target = $region17
    $region16: #{tpu_custom_call.1} parent=1 // pred_region
      %39 = dma.done [#allocation7], 16
    $region17: #{tpu_custom_call.1} parent=1 // pred_fallthru
      _
    %p40 = scmp.eq.s32.totalorder 0, 0
    // Predicated region
    $region18: #{tpu_custom_call.1} parent=1 // pred_check
      %p41 = pneg %p40
    $region19: #{tpu_custom_call.1} parent=1 // pred_check_branch
      %43 = sbr.rel (%p41) target = $region21
    $region20: #{tpu_custom_call.1} parent=1 // pred_region
      %vm44 = vcmask 0
      %45 = vst.msk [vmem:[#allocation2] sm:$0x1] %vm44, 0.0
    $region21: #{tpu_custom_call.1} parent=1 // pred_fallthru
      _
    %v46 = vld [vmem:[#allocation3] sm:$0xf]
    %v47 = vld [vmem:[#allocation6] sm:$0x1]
    %v48 = vlaneseq
    %v49 = vshrl.u32 %v48, 7
    %v50 = vperm.slane %v47, 0
    %vm51 = vcmp.eq.s32.totalorder %v49, %v50
    %vm52 = vcmask 1043456
    %v53 = vsel %vm52, %v46, -inf
    %v54 = vrot.slane %v53, 4
    %v55 = vmax.f32 %v53, %v54
    %v56 = vrot.slane %v55, 2
    %v57 = vmax.f32 %v55, %v56
    %v58 = vrot.slane %v57, 1
    %v59 = vmax.f32 %v57, %v58
    %v60 = vsub.f32 %v46, %v59
    %v61 = vmul.f32 %v60, 1.442695
    %v62 = vpow.pop %v61
    %v63 = vsel %vm52, %v62, 0.0
    %v64 = vrot.slane %v63, 4
    %v65 = vadd.f32 %v63, %v64
    %v66 = vrot.slane %v65, 2
    %v67 = vadd.f32 %v65, %v66
    %v68 = vrot.slane %v67, 1
    %v69 = vadd.f32 %v67, %v68
    %v70 = vlog2.pop %v69
    %v71 = vmul.f32 %v70, 0.6931472
    %v72 = vsel %vm51, %v46, 0.0
    %v73 = vsel %vm52, %v72, 0.0
    %v74 = vrot.slane %v73, 4
    %v75 = vadd.f32 %v73, %v74
    %v76 = vrot.slane %v75, 2
    %v77 = vadd.f32 %v75, %v76
    %v78 = vrot.slane %v77, 1
    %v79 = vadd.f32 %v77, %v78
    %v80 = vsub.f32 %v79, %v59
    %v81 = vsub.f32 %v80, %v71
    %v82 = vmul.f32 %v81, 1.442695
    %v83 = vpow.pop %v82
    %v84 = vsub.f32 1.0, %v83
    %v85 = vmul.f32 %v84, %v84
    %v86 = vsub.f32 0.0, %v85
    %v87 = vmul.f32 %v86, %v81
    %v88 = vlaneseq
    %v89 = vand.u32 %v88, 127
    %s90 = smul.u32 0, 128
    %v91 = vstv %s90
    %v92 = vadd.s32 %v91, %v89
    %vm93 = vcmp.lt.s32.totalorder %v92, 8
    %v94 = vsel %vm93, %v87, 0.0
    %v95 = vld [vmem:[#allocation2] sm:$0x1]
    %96 = vadd.xlane.f32.xlu0 %v94
    %v97 = vpop.xlane.xlu0 %96
    %v98 = vadd.f32 %v95, %v97
    %vm99 = vcmask 0
    %100 = vst.msk [vmem:[#allocation2] sm:$0x1] %vm99, %v98
    // Predicated region
    $region22: #{tpu_custom_call.1} parent=1 // pred_check
      %p101 = pneg %p40
    $region23: #{tpu_custom_call.1} parent=1 // pred_check_branch
      %103 = sbr.rel (%p101) target = $region25
    $region24: #{tpu_custom_call.1} parent=1 // pred_region
      %v104 = vld [vmem:[#allocation2] sm:$0x1]
      %v105 = vmul.f32 %v104, 0.03125
      %106 = vst.msk [vmem:[#allocation8] sm:$0x1] %vm99, %v105
    $region25: #{tpu_custom_call.1} parent=1 // pred_fallthru
      _
    // Predicated region
    $region26: #{tpu_custom_call.1} parent=1 // pred_check
      _
    $region27: #{tpu_custom_call.1} parent=1 // pred_check_branch
      %108 = sbr.rel (0) target = $region29
    $region28: #{tpu_custom_call.1} parent=1 // pred_region
      %110 = vsyncadd [#allocation5], 0
      %s112 = sshll.u32 [#allocation8], 4
      %s113 = int_to_ptr.vmem [resolvable:$true] %s112
      %s114 = sshll.u32 %s2, 4
      %s115 = int_to_ptr.hbm [resolvable:$true] %s114
      %117 = dma.vmem_to_hbm [thread:$0]  %s113, 16, %s115, [#allocation5]
    $region29: #{tpu_custom_call.1} parent=1 // pred_fallthru
      _
    // Predicated region
    $region30: #{tpu_custom_call.1} parent=1 // pred_check
      _
    $region31: #{tpu_custom_call.1} parent=1 // pred_check_branch
      %119 = sbr.rel (0) target = $region33
    $region32: #{tpu_custom_call.1} parent=1 // pred_region
      %121 = dma.done [#allocation5], 16
    $region33: #{tpu_custom_call.1} parent=1 // pred_fallthru
      _
    %122 = vsyncpa [#allocation4], 1
    %123 = vsyncpa [#allocation7], 1
    %124 = vsyncpa [#allocation5], 1

</llo_original>
